<compile_context>
chip_gen: v6e
topology: v6e:2x2x1
jax: 0.10.0
libtpu: 0.0.40
codegen_flags: <defaults>
</compile_context>

<pallas_src>
import jax
import jax.numpy as jnp
from jax.experimental import pallas as pl
from jax.experimental.pallas import tpu as pltpu

NUM_CLASSES = 28
LANE = 128          # TPU lane width (last-dim tiling quantum)
CLASSES_PAD = 128   # 28 padded up to one full lane group


def _round_up(x, m):
    return (x + m - 1) // m * m


def _cdiv(a, b):
    return -(-a // b)


def _make_single_k_kernel(units, upad):
    """One contraction step: direct dot + bias, no scratch, no pl.when."""
    mask_tail = (units != upad)

    def kernel(x_ref, w_ref, b_ref, o_ref):
        x = x_ref[...]
        if mask_tail:
            # Zero the ragged K tail (OOB lanes of the partial block may hold
            # stale garbage; 0 * NaN would poison the MXU accumulation).
            lane = jax.lax.broadcasted_iota(jnp.int32, x.shape, 1)
            x = jnp.where(lane < units, x, jnp.zeros_like(x))
        y = jnp.dot(x, w_ref[...], preferred_element_type=jnp.float32)
        o_ref[...] = (y + b_ref[...]).astype(o_ref.dtype)

    return kernel


def _make_tiled_k_kernel(units, tk_eff, n_k, resident_w):
    """K-tiled matmul with f32 VMEM accumulator; weight optionally resident."""
    mask_tail = (units % tk_eff != 0)

    def kernel(x_ref, w_ref, b_ref, o_ref, acc_ref):
        k = pl.program_id(1)
        x = x_ref[...]
        if mask_tail:
            lane = jax.lax.broadcasted_iota(jnp.int32, x.shape, 1)
            col = k * tk_eff + lane
            x = jnp.where(col < units, x, jnp.zeros_like(x))
        if resident_w:
            # Full padded weight lives in VMEM for the whole grid; slice the
            # current K chunk (offset is a static multiple of the lane width).
            off = pl.multiple_of(k * tk_eff, LANE)
            w = w_ref[pl.ds(off, tk_eff), :]
        else:
            w = w_ref[...]
        part = jnp.dot(x, w, preferred_element_type=jnp.float32)

        @pl.when(k == 0)
        def _():
            acc_ref[...] = part          # no zero-init + "+=": one store saved

        @pl.when(k != 0)
        def _():
            acc_ref[...] += part

        @pl.when(k == n_k - 1)
        def _():
            o_ref[...] = (acc_ref[...] + b_ref[...]).astype(o_ref.dtype)

    return kernel


def readout_forward(x, weight, bias, *, use_pallas=None, tb=512, tk=1024):
    """Pallas equivalent of ReadoutLayer.forward.

    x      : any shape (B, ...)  -> flattened to (B, units)
    weight : (28, units)  (PyTorch nn.Linear convention)
    bias   : (28,)
    returns: (B, 28)
    """
    batch = x.shape[0]
    x2d = jnp.reshape(x, (batch, -1))                 # glue: view(B, -1)
    # Don't force-upcast the activation stream (mem-bound); only fix non-float
    # inputs.  bf16/f32 both feed the MXU natively with f32 accumulation.
    if not jnp.issubdtype(x2d.dtype, jnp.floating):
        x2d = x2d.astype(jnp.float32)
    units = x2d.shape[1]
    assert weight.shape == (NUM_CLASSES, units)
    out_dtype = x2d.dtype
    dsize = jnp.dtype(out_dtype).itemsize
    sublane = 16 if dsize == 2 else 8                 # 16-bit dtypes need 16

    # Tiny-problem fast path: a Pallas launch is pure overhead below this size.
    if use_pallas is None:
        use_pallas = batch * units >= (1 << 16)
    if not use_pallas:
        y = jnp.dot(x2d, jnp.transpose(weight).astype(out_dtype),
                    preferred_element_type=jnp.float32)
        return (y + bias.astype(jnp.float32)).astype(out_dtype)

    # ---- contraction (K) tiling — x itself is never padded -----------------
    upad128 = _round_up(units, LANE)
    single_k_limit = max(tk, 2048)
    if upad128 <= single_k_limit:
        n_k = 1
        tk_eff = upad128
        upad = upad128
        resident_w = True
    else:
        tk_eff = _round_up(min(tk, upad128), LANE)
        upad = _round_up(upad128, tk_eff)
        n_k = upad // tk_eff
        # Keep the whole weight VMEM-resident (DMA'd once) when it is small
        # enough; otherwise stream it per-K and grow the batch tile so the
        # per-batch-tile re-stream amortizes.
        resident_w = upad * CLASSES_PAD * dsize <= (8 << 20)
        if not resident_w:
            tb = max(tb, 1024)

    # ---- batch tiling: balanced tiles, even count for v7x's two TCs --------
    n_bt = _cdiv(batch, tb)
    if batch >= 2 * sublane and n_bt % 2 == 1:
        n_bt += 1
    tb_eff = _round_up(_cdiv(batch, n_bt), sublane)
    grid_b = _cdiv(batch, tb_eff)

    # ---- small glue tensors (weight/bias only; x untouched) ----------------
    w_t = jnp.transpose(weight).astype(out_dtype)               # (units, 28)
    w_pad = jnp.pad(w_t, ((0, upad - units),
                          (0, CLASSES_PAD - NUM_CLASSES)))
    b_pad = jnp.pad(jnp.reshape(bias, (1, NUM_CLASSES)).astype(jnp.float32),
                    ((0, 0), (0, CLASSES_PAD - NUM_CLASSES)))
    wdsize = jnp.dtype(w_pad.dtype).itemsize

    # Bytes consistent with the actual DMA pattern (advisory for XLA).
    w_bytes = upad * CLASSES_PAD * wdsize
    if n_k > 1 and not resident_w:
        w_bytes *= grid_b                                       # re-streamed
    cost = pl.CostEstimate(
        flops=2 * grid_b * tb_eff * upad * CLASSES_PAD,
        transcendentals=0,
        bytes_accessed=(grid_b * tb_eff * upad * dsize          # x tiles
                        + w_bytes
                        + CLASSES_PAD * 4                       # bias
                        + batch * CLASSES_PAD * dsize))         # output

    if n_k == 1:
        kernel = _make_single_k_kernel(units, upad)
        out = pl.pallas_call(
            kernel,
            out_shape=jax.ShapeDtypeStruct((batch, CLASSES_PAD), out_dtype),
            grid_spec=pltpu.PrefetchScalarGridSpec(
                num_scalar_prefetch=0,
                grid=(grid_b,),
                in_specs=[
                    pl.BlockSpec((tb_eff, upad), lambda i: (i, 0)),
                    pl.BlockSpec((upad, CLASSES_PAD), lambda i: (0, 0)),
                    pl.BlockSpec((1, CLASSES_PAD), lambda i: (0, 0)),
                ],
                out_specs=pl.BlockSpec((tb_eff, CLASSES_PAD), lambda i: (i, 0)),
            ),
            compiler_params=pltpu.CompilerParams(
                dimension_semantics=("parallel",)),
            cost_estimate=cost,
        )(x2d, w_pad, b_pad)
    else:
        kernel = _make_tiled_k_kernel(units, tk_eff, n_k, resident_w)
        if resident_w:
            w_spec = pl.BlockSpec((upad, CLASSES_PAD), lambda i, k: (0, 0))
        else:
            w_spec = pl.BlockSpec((tk_eff, CLASSES_PAD), lambda i, k: (k, 0))
        out = pl.pallas_call(
            kernel,
            out_shape=jax.ShapeDtypeStruct((batch, CLASSES_PAD), out_dtype),
            grid_spec=pltpu.PrefetchScalarGridSpec(
                num_scalar_prefetch=0,
                grid=(grid_b, n_k),
                in_specs=[
                    pl.BlockSpec((tb_eff, tk_eff), lambda i, k: (i, k)),
                    w_spec,
                    pl.BlockSpec((1, CLASSES_PAD), lambda i, k: (0, 0)),
                ],
                out_specs=pl.BlockSpec((tb_eff, CLASSES_PAD),
                                       lambda i, k: (i, 0)),
                scratch_shapes=[pltpu.VMEM((tb_eff, CLASSES_PAD), jnp.float32)],
            ),
            compiler_params=pltpu.CompilerParams(
                dimension_semantics=("parallel", "arbitrary")),
            cost_estimate=cost,
        )(x2d, w_pad, b_pad)

    return out[:, :NUM_CLASSES]


def init_readout_params(key, units):
    """Deterministic synthetic init matching nn.Linear(units, 28) shapes."""
    kw, kb = jax.random.split(key)
    bound = 1.0 / jnp.sqrt(jnp.float32(units))
    weight = jax.random.uniform(kw, (NUM_CLASSES, units), jnp.float32,
                                minval=-bound, maxval=bound)
    bias = jax.random.uniform(kb, (NUM_CLASSES,), jnp.float32,
                              minval=-bound, maxval=bound)
    return weight, bias


if __name__ == "__main__":
    key = jax.random.PRNGKey(0)
    k_x, k_p, k_x2, k_p2, k_x3, k_p3, k_x4, k_p4 = jax.random.split(key, 8)

    # 1) Small demo consistent with the module: x.view(B, -1) -> Linear(units, 28).
    batch, c, h, w = 2, 4, 8, 8
    units = c * h * w
    x = jax.random.normal(k_x, (batch, c, h, w), jnp.float32)
    weight, bias = init_readout_params(k_p, units)
    out = jax.block_until_ready(readout_forward(x, weight, bias, use_pallas=True))
    assert out.shape == (batch, NUM_CLASSES)
    ref = jnp.reshape(x, (batch, -1)) @ weight.T + bias
    assert jnp.allclose(out, ref, atol=2e-2, rtol=2e-2)

    # 2) Multi-batch-tile, single-K path (units multiple of 128).
    batch2, units2 = 320, 1536
    x2 = jax.random.normal(k_x2, (batch2, units2), jnp.float32)
    weight2, bias2 = init_readout_params(k_p2, units2)
    out2 = jax.block_until_ready(readout_forward(x2, weight2, bias2))
    ref2 = x2 @ weight2.T + bias2
    assert out2.shape == (batch2, NUM_CLASSES)
    assert jnp.allclose(out2, ref2, atol=2e-2, rtol=2e-2)

    # 3) K-tiled path with ragged (masked) contraction tail + resident weight.
    batch3, units3 = 48, 2500
    x3 = jax.random.normal(k_x3, (batch3, units3), jnp.float32)
    weight3, bias3 = init_readout_params(k_p3, units3)
    out3 = jax.block_until_ready(readout_forward(x3, weight3, bias3,
                                                 use_pallas=True, tk=1024))
    ref3 = x3 @ weight3.T + bias3
    assert out3.shape == (batch3, NUM_CLASSES)
    assert jnp.allclose(out3, ref3, atol=2e-2, rtol=2e-2)

    # 4) bf16 activations (exercises the 16-row sublane rounding).
    batch4, units4 = 10, 384
    x4 = jax.random.normal(k_x4, (batch4, units4), jnp.float32).astype(jnp.bfloat16)
    weight4, bias4 = init_readout_params(k_p4, units4)
    out4 = jax.block_until_ready(readout_forward(x4, weight4, bias4,
                                                 use_pallas=True))
    ref4 = (x4.astype(jnp.float32)
            @ weight4.astype(jnp.bfloat16).astype(jnp.float32).T + bias4)
    assert out4.shape == (batch4, NUM_CLASSES)
    assert jnp.allclose(out4.astype(jnp.float32), ref4, atol=5e-2, rtol=5e-2)

    print("KERNEL_OK")
</pallas_src>

<mosaic_0001>
module attributes {stable_mosaic.version = 11 : i64} {
  func.func @kernel(%arg0: i32, %arg1: memref<8x256xf32, #tpu.memory_space<vmem>>, %arg2: memref<256x128xf32, #tpu.memory_space<vmem>>, %arg3: memref<1x128xf32, #tpu.memory_space<vmem>>, %arg4: memref<8x128xf32, #tpu.memory_space<vmem>>) attributes {dimension_semantics = [#tpu.dimension_semantics<parallel>], iteration_bounds = array<i64: 1>, scalar_prefetch = 0 : i64, scratch_operands = 0 : i64, tpu.core_type = #tpu.core_type<tc>, window_params = [{transform_indices = @transform_0, window_bounds = array<i64: 8, 256>}, {pipeline_mode = #tpu.pipeline_mode<synchronous>, transform_indices = @transform_1, window_bounds = array<i64: 256, 128>}, {pipeline_mode = #tpu.pipeline_mode<synchronous>, transform_indices = @transform_2, window_bounds = array<i64: 1, 128>}, {transform_indices = @transform_3, window_bounds = array<i64: 8, 128>}]} {
    %c0 = arith.constant 0 : index
    %c0_0 = arith.constant 0 : index
    %0 = vector.load %arg1[%c0, %c0_0] : memref<8x256xf32, #tpu.memory_space<vmem>>, vector<8x256xf32>
    %c0_1 = arith.constant 0 : index
    %c0_2 = arith.constant 0 : index
    %1 = vector.load %arg2[%c0_1, %c0_2] : memref<256x128xf32, #tpu.memory_space<vmem>>, vector<256x128xf32>
    %cst = arith.constant dense<0.000000e+00> : vector<8x128xf32>
    %2 = tpu.matmul %0, %1, %cst {dimension_numbers = #tpu.dot_dimension_numbers<[1], [0], [0], [1], [0, 0, 1, 1], [], []>} : vector<8x256xf32>, vector<256x128xf32>, vector<8x128xf32> -> vector<8x128xf32>
    %c0_3 = arith.constant 0 : index
    %c0_4 = arith.constant 0 : index
    %3 = vector.load %arg3[%c0_3, %c0_4] : memref<1x128xf32, #tpu.memory_space<vmem>>, vector<1x128xf32>
    %4 = vector.broadcast %3 : vector<1x128xf32> to vector<8x128xf32>
    %5 = arith.addf %2, %4 : vector<8x128xf32>
    %c0_5 = arith.constant 0 : index
    %c0_6 = arith.constant 0 : index
    %6 = vector.load %arg4[%c0_5, %c0_6] : memref<8x128xf32, #tpu.memory_space<vmem>>, vector<8x128xf32>
    tpu.vector_store %arg4[%c0_5, %c0_6], %5 {strides = array<i32>} : memref<8x128xf32, #tpu.memory_space<vmem>>, vector<8x128xf32>,
    return
  }
  func.func @transform_0(%arg0: i32) -> (i32, i32) {
    %c0_i32 = arith.constant 0 : i32
    %c0_i32_0 = arith.constant 0 : i32
    return %arg0, %c0_i32 : i32, i32
  }
  func.func @transform_1(%arg0: i32) -> (i32, i32) {
    %c0_i32 = arith.constant 0 : i32
    %c0_i32_0 = arith.constant 0 : i32
    %c0_i32_1 = arith.constant 0 : i32
    return %c0_i32, %c0_i32_0 : i32, i32
  }
  func.func @transform_2(%arg0: i32) -> (i32, i32) {
    %c0_i32 = arith.constant 0 : i32
    %c0_i32_0 = arith.constant 0 : i32
    %c0_i32_1 = arith.constant 0 : i32
    return %c0_i32, %c0_i32_0 : i32, i32
  }
  func.func @transform_3(%arg0: i32) -> (i32, i32) {
    %c0_i32 = arith.constant 0 : i32
    %c0_i32_0 = arith.constant 0 : i32
    return %arg0, %c0_i32 : i32, i32
  }
}

</mosaic_0001>

<llo_original>
// kernel: tpu_custom_call.1
$region0: #{tpu_custom_call.1}
  #allocation0 [shape = 'u32[]', space=smem, size = 0x4, offset = 0x4, fixed_abs, tag = 'smem constant byte address 0x4 - core index']
  #allocation1 [shape = 'u32[144,128]{1,0:T(1,128)}', space=vmem, size = 0x12000, scoped, tag = 'internal scratch']
  %s0 = inlined_call_operand.hbm [shape: f32[2,256], index: 0, kind: input, shape index: {}]
  %s1 = inlined_call_operand.hbm [shape: f32[256,128], index: 1, kind: input, shape index: {}]
  %s2 = inlined_call_operand.vmem [shape: f32[1,128], index: 2, kind: input, shape index: {}]
  %s3 = inlined_call_operand.hbm [shape: f32[2,128], index: 3, kind: output, shape index: {}]
  %s4 = sld [smem:[#allocation0]]
  $region30: #{tpu_custom_call.1} parent=0
    _
  %s6 = ssub.s32 1, %s4
  %s7 = scalar_select 0, %s6, %s4
  $region1: #{tpu_custom_call.1} parent=0
    #allocation2 [shape = 'u8[8192]{0}', space=vmem, size = 0x2000, scoped, tag = 'input window, operand 0, single buffered']
    #allocation3 [shape = 's32[1]{0}', space=sflag, size = 0x4, scoped, tag = 'scoped memory for tpu_custom_call.1']
    #allocation4 [shape = 's32[1]{0}', space=sflag, size = 0x4, scoped, tag = 'scoped memory for tpu_custom_call.1']
    #allocation5 [shape = 'u8[131072]{0}', space=vmem, size = 0x20000, scoped, tag = 'input window, operand 1, single buffered']
    #allocation6 [shape = 's32[1]{0}', space=sflag, size = 0x4, scoped, tag = 'scoped memory for tpu_custom_call.1']
    #allocation7 [shape = 'u8[4096]{0}', space=vmem, size = 0x1000, scoped, tag = 'output window, operand 0, single buffered']
    %8 = vsyncpa [#allocation3], 0
    %9 = vsyncpa [#allocation6], 0
    %10 = vsyncpa [#allocation4], 0
    // Predicated region
    $region2: #{tpu_custom_call.1} parent=1 // pred_check
      _
    $region3: #{tpu_custom_call.1} parent=1 // pred_check_branch
      %12 = sbr.rel (0) target = $region5
    $region4: #{tpu_custom_call.1} parent=1 // pred_region
      %s14 = ssub.s32 256, 64
      %15 = vsyncadd [#allocation3], %s14
      %s16 = sshll.u32 [#allocation2], 4
      %s17 = int_to_ptr.vmem [resolvable:$true] %s16
      %22 = dma.hbm_to_vmem [thread:$0]  %s0, 64, %s17, [#allocation3], 64, 64, 4
    $region5: #{tpu_custom_call.1} parent=1 // pred_fallthru
      _
    // Predicated region
    $region6: #{tpu_custom_call.1} parent=1 // pred_check
      _
    $region7: #{tpu_custom_call.1} parent=1 // pred_check_branch
      %24 = sbr.rel (0) target = $region9
    $region8: #{tpu_custom_call.1} parent=1 // pred_region
      %s26 = ssub.s32 4096, 4096
      %27 = vsyncadd [#allocation6], %s26
      %s28 = sshll.u32 [#allocation5], 4
      %s29 = int_to_ptr.vmem [resolvable:$true] %s28
      %34 = dma.hbm_to_vmem [thread:$0]  %s1, 4096, %s29, [#allocation6], 128, 128, 8
    $region9: #{tpu_custom_call.1} parent=1 // pred_fallthru
      _
    // Predicated region
    $region10: #{tpu_custom_call.1} parent=1 // pred_check
      _
    $region11: #{tpu_custom_call.1} parent=1 // pred_check_branch
      %36 = sbr.rel (0) target = $region13
    $region12: #{tpu_custom_call.1} parent=1 // pred_region
      _
    $region13: #{tpu_custom_call.1} parent=1 // pred_fallthru
      _
    // Predicated region
    $region14: #{tpu_custom_call.1} parent=1 // pred_check
      _
    $region15: #{tpu_custom_call.1} parent=1 // pred_check_branch
      %38 = sbr.rel (0) target = $region17
    $region16: #{tpu_custom_call.1} parent=1 // pred_region
      %39 = dma.done [#allocation3], 256
    $region17: #{tpu_custom_call.1} parent=1 // pred_fallthru
      _
    // Predicated region
    $region18: #{tpu_custom_call.1} parent=1 // pred_check
      _
    $region19: #{tpu_custom_call.1} parent=1 // pred_check_branch
      %41 = sbr.rel (0) target = $region21
    $region20: #{tpu_custom_call.1} parent=1 // pred_region
      %42 = dma.done [#allocation6], 4096
    $region21: #{tpu_custom_call.1} parent=1 // pred_fallthru
      _
    %v43 = vld [vmem:[#allocation2] sm:$0xf]
    %v44 = vld [vmem:[#allocation2 + $0x4] sm:$0xf]
    %v45 = vld [vmem:[#allocation2 + $0x8] sm:$0xf]
    %v46 = vld [vmem:[#allocation2 + $0xc] sm:$0xf]
    %v47 = vld [vmem:[#allocation5] sm:$0xff]
    %v48 = vld [vmem:[#allocation5 + $0x8] sm:$0xff]
    %v49 = vld [vmem:[#allocation5 + $0x10] sm:$0xff]
    %v50 = vld [vmem:[#allocation5 + $0x18] sm:$0xff]
    %v51 = vld [vmem:[#allocation5 + $0x20] sm:$0xff]
    %v52 = vld [vmem:[#allocation5 + $0x28] sm:$0xff]
    %v53 = vld [vmem:[#allocation5 + $0x30] sm:$0xff]
    %v54 = vld [vmem:[#allocation5 + $0x38] sm:$0xff]
    %v55 = vld [vmem:[#allocation5 + $0x40] sm:$0xff]
    %v56 = vld [vmem:[#allocation5 + $0x48] sm:$0xff]
    %v57 = vld [vmem:[#allocation5 + $0x50] sm:$0xff]
    %v58 = vld [vmem:[#allocation5 + $0x58] sm:$0xff]
    %v59 = vld [vmem:[#allocation5 + $0x60] sm:$0xff]
    %v60 = vld [vmem:[#allocation5 + $0x68] sm:$0xff]
    %v61 = vld [vmem:[#allocation5 + $0x70] sm:$0xff]
    %v62 = vld [vmem:[#allocation5 + $0x78] sm:$0xff]
    %v63 = vld [vmem:[#allocation5 + $0x80] sm:$0xff]
    %v64 = vld [vmem:[#allocation5 + $0x88] sm:$0xff]
    %v65 = vld [vmem:[#allocation5 + $0x90] sm:$0xff]
    %v66 = vld [vmem:[#allocation5 + $0x98] sm:$0xff]
    %v67 = vld [vmem:[#allocation5 + $0xa0] sm:$0xff]
    %v68 = vld [vmem:[#allocation5 + $0xa8] sm:$0xff]
    %v69 = vld [vmem:[#allocation5 + $0xb0] sm:$0xff]
    %v70 = vld [vmem:[#allocation5 + $0xb8] sm:$0xff]
    %v71 = vld [vmem:[#allocation5 + $0xc0] sm:$0xff]
    %v72 = vld [vmem:[#allocation5 + $0xc8] sm:$0xff]
    %v73 = vld [vmem:[#allocation5 + $0xd0] sm:$0xff]
    %v74 = vld [vmem:[#allocation5 + $0xd8] sm:$0xff]
    %v75 = vld [vmem:[#allocation5 + $0xe0] sm:$0xff]
    %v76 = vld [vmem:[#allocation5 + $0xe8] sm:$0xff]
    %v77 = vld [vmem:[#allocation5 + $0xf0] sm:$0xff]
    %v78 = vld [vmem:[#allocation5 + $0xf8] sm:$0xff]
    %v79 = vld [vmem:[%s2] sm:$0x1]
    %v81 = vlaneseq
    %v82 = vshrl.u32 %v81, 7
    %v83 = vsub.s32 0, %v82
    %v84 = vrot.slane %v79, %v83
    %v90 = vcombine.low %v43, %v44
    %v91 = vcombine.low %v45, %v46
    %v93 = vunpack.c.l.s4 1983009808
    %v94 = vunpack.c.0.s8 %v93
    %v95 = vlaneseq
    %v96 = vshrl.u32 %v95, 7
    %v97 = vsub.s32 %v94, %v96
    %v98 = vrot.slane %v90, %v97
    %v100 = vunpack.c.l.s4 1983009808
    %v101 = vunpack.c.0.s8 %v100
    %v102 = vlaneseq
    %v103 = vshrl.u32 %v102, 7
    %v104 = vsub.s32 %v101, %v103
    %v105 = vrot.slane %v91, %v104
    %v106 = vcombine.low %v98, %v105
    %v107 = vcombine.high %v98, %v105
    %110 = vmatprep.subr.mxu0 0.0
    %111 = vmatpush1.msra.mxu0 %v62
    %112 = vmatprep.subr.mxu0 0.0
    %113 = vmatpush1.msra.mxu0 %v61
    %114 = vmatprep.subr.mxu0 0.0
    %115 = vmatpush1.msra.mxu0 %v60
    %116 = vmatprep.subr.mxu0 0.0
    %117 = vmatpush1.msra.mxu0 %v59
    %118 = vmatprep.subr.mxu0 0.0
    %119 = vmatpush1.msra.mxu0 %v58
    %120 = vmatprep.subr.mxu0 0.0
    %121 = vmatpush1.msra.mxu0 %v57
    %122 = vmatprep.subr.mxu0 0.0
    %123 = vmatpush1.msra.mxu0 %v56
    %124 = vmatprep.subr.mxu0 0.0
    %125 = vmatpush1.msra.mxu0 %v55
    %126 = vmatprep.subr.mxu0 0.0
    %127 = vmatpush1.msra.mxu0 %v54
    %128 = vmatprep.subr.mxu0 0.0
    %129 = vmatpush1.msra.mxu0 %v53
    %130 = vmatprep.subr.mxu0 0.0
    %131 = vmatpush1.msra.mxu0 %v52
    %132 = vmatprep.subr.mxu0 0.0
    %133 = vmatpush1.msra.mxu0 %v51
    %134 = vmatprep.subr.mxu0 0.0
    %135 = vmatpush1.msra.mxu0 %v50
    %136 = vmatprep.subr.mxu0 0.0
    %137 = vmatpush1.msra.mxu0 %v49
    %138 = vmatprep.subr.mxu0 0.0
    %139 = vmatpush1.msra.mxu0 %v48
    %140 = vmatprep.subr.mxu0 0.0
    %141 = vmatpush1.msra.mxu0 %v47
    %142 = vmatprep.subr.mxu0 0.0
    %143 = vmatpush2.msra.mxu0 %v78
    %144 = vmatprep.subr.mxu0 0.0
    %145 = vmatpush2.msra.mxu0 %v77
    %146 = vmatprep.subr.mxu0 0.0
    %147 = vmatpush2.msra.mxu0 %v76
    %148 = vmatprep.subr.mxu0 0.0
    %149 = vmatpush2.msra.mxu0 %v75
    %150 = vmatprep.subr.mxu0 0.0
    %151 = vmatpush2.msra.mxu0 %v74
    %152 = vmatprep.subr.mxu0 0.0
    %153 = vmatpush2.msra.mxu0 %v73
    %154 = vmatprep.subr.mxu0 0.0
    %155 = vmatpush2.msra.mxu0 %v72
    %156 = vmatprep.subr.mxu0 0.0
    %157 = vmatpush2.msra.mxu0 %v71
    %158 = vmatprep.subr.mxu0 0.0
    %159 = vmatpush2.msra.mxu0 %v70
    %160 = vmatprep.subr.mxu0 0.0
    %161 = vmatpush2.msra.mxu0 %v69
    %162 = vmatprep.subr.mxu0 0.0
    %163 = vmatpush2.msra.mxu0 %v68
    %164 = vmatprep.subr.mxu0 0.0
    %165 = vmatpush2.msra.mxu0 %v67
    %166 = vmatprep.subr.mxu0 0.0
    %167 = vmatpush2.msra.mxu0 %v66
    %168 = vmatprep.subr.mxu0 0.0
    %169 = vmatpush2.msra.mxu0 %v65
    %170 = vmatprep.subr.mxu0 0.0
    %171 = vmatpush2.msra.mxu0 %v64
    %172 = vmatprep.subr.mxu0 0.0
    %173 = vmatpush2.msra.mxu0 %v63
    %174 = vmatprep.mubr.f32.mxu0 %v107
    %175 = vmatmul.mubr.f32.gmra.mxu0 %v106
    %v176 = vpop.f32.mrf.mxu0
    %v177 = vadd.f32 %v84, %v176
    %v178 = vpop.f32.mrf.mxu0
    %179 = vdwg.mxu0
    %180 = vst [vmem:[#allocation7] sm:$0xff] %v177
    // Predicated region
    $region22: #{tpu_custom_call.1} parent=1 // pred_check
      _
    $region23: #{tpu_custom_call.1} parent=1 // pred_check_branch
      %182 = sbr.rel (0) target = $region25
    $region24: #{tpu_custom_call.1} parent=1 // pred_region
      %s184 = ssub.s32 128, 32
      %185 = vsyncadd [#allocation4], %s184
      %s186 = sshll.u32 [#allocation7], 4
      %s187 = int_to_ptr.vmem [resolvable:$true] %s186
      %192 = dma.vmem_to_hbm [thread:$0]  %s187, 32, %s3, [#allocation4], 32, 32, 2
    $region25: #{tpu_custom_call.1} parent=1 // pred_fallthru
      _
    // Predicated region
    $region26: #{tpu_custom_call.1} parent=1 // pred_check
      _
    $region27: #{tpu_custom_call.1} parent=1 // pred_check_branch
      %194 = sbr.rel (0) target = $region29
    $region28: #{tpu_custom_call.1} parent=1 // pred_region
      %195 = dma.done [#allocation4], 128
    $region29: #{tpu_custom_call.1} parent=1 // pred_fallthru
      _
    %196 = vsyncpa [#allocation3], 1
    %197 = vsyncpa [#allocation6], 1
    %198 = vsyncpa [#allocation4], 1

</llo_original>
